<compile_context>
chip_gen: v7x
topology: tpu7x:2x2x1
jax: 0.10.0
libtpu: 0.0.40
codegen_flags: <defaults>
</compile_context>

<pallas_src>
import functools

import jax
import jax.numpy as jnp
from jax.experimental import pallas as pl
from jax.experimental.pallas import tpu as pltpu

# --- module hyperparameters (MFCC(sample_rate, n_mfcc, n_mels, window_hop, center)) ---
SAMPLE_RATE = 16000
N_MFCC = 8
N_MELS = 16
N_FFT = 64          # window_hop[0]
HOP = 16            # window_hop[1]
CENTER = True
LOG_MELS = False    # default -> AmplitudeToDB path
TOP_DB = 80.0
AMIN = 1e-10


def _hann_window(n):
    i = jnp.arange(n, dtype=jnp.float32)
    return 0.5 - 0.5 * jnp.cos(2.0 * jnp.pi * i / n)   # periodic hann (torch default)


def _mel_fbanks(n_freqs, f_min, f_max, n_mels, sample_rate):
    # torchaudio melscale_fbanks, mel_scale='htk', norm='slaney'
    # (module spec: norm = 'slaney' if norm else None, default norm=1 -> 'slaney')
    all_freqs = jnp.linspace(0.0, sample_rate // 2, n_freqs)

    def hz_to_mel(f):
        return 2595.0 * jnp.log10(1.0 + f / 700.0)

    def mel_to_hz(m):
        return 700.0 * (10.0 ** (m / 2595.0) - 1.0)

    m_min = hz_to_mel(jnp.asarray(f_min, jnp.float32))
    m_max = hz_to_mel(jnp.asarray(f_max, jnp.float32))
    m_pts = jnp.linspace(m_min, m_max, n_mels + 2)
    f_pts = mel_to_hz(m_pts)
    f_diff = f_pts[1:] - f_pts[:-1]                       # (n_mels+1,)
    slopes = f_pts[None, :] - all_freqs[:, None]          # (n_freqs, n_mels+2)
    down = -slopes[:, :-2] / f_diff[:-1]
    up = slopes[:, 2:] / f_diff[1:]
    fb = jnp.maximum(0.0, jnp.minimum(down, up))          # (n_freqs, n_mels)
    enorm = 2.0 / (f_pts[2:n_mels + 2] - f_pts[:n_mels])  # slaney norm
    return (fb * enorm[None, :]).astype(jnp.float32)


def _dct_matrix(n_mfcc, n_mels):
    # torchaudio create_dct(n_mfcc, n_mels, norm='ortho') -> (n_mels, n_mfcc)
    n = jnp.arange(n_mels, dtype=jnp.float32)
    k = jnp.arange(n_mfcc, dtype=jnp.float32)[:, None]
    dct = jnp.cos(jnp.pi / n_mels * (n[None, :] + 0.5) * k)   # (n_mfcc, n_mels)
    dct = dct.at[0].multiply(1.0 / jnp.sqrt(2.0))
    dct = dct * jnp.sqrt(2.0 / n_mels)
    return dct.T.astype(jnp.float32)


def mfcc_kernel(x_ref, dft_ref, fb_ref, dct_ref, out_ref):
    """x_ref: (Bt, 1, Tp) padded waveform; out_ref: (Bt, n_mfcc, n_frames)."""
    Bt = x_ref.shape[0]
    Tp = x_ref.shape[2]
    n_mfcc = out_ref.shape[1]
    F = out_ref.shape[2]            # n_frames
    n_fft = dft_ref.shape[0]
    n_freqs = fb_ref.shape[0]
    n_mels = fb_ref.shape[1]

    x = x_ref[...].reshape(Bt, Tp)                               # (Bt, Tp)

    # In-kernel framing: F overlapping windows (static slices, stride = HOP).
    # TODO(synk): for very long audio (thousands of frames), tile the frame axis
    # as a second grid dimension instead of unrolling F static slices.
    rows = [x[:, i * HOP:i * HOP + n_fft] for i in range(F)]     # each (Bt, n_fft)
    if Bt == 1:
        frames = jnp.concatenate(rows, axis=0)                   # (F, n_fft)
    else:
        frames = jnp.stack(rows, axis=1).reshape(Bt * F, n_fft)  # (Bt*F, n_fft)

    # Windowed real DFT as a single matmul against [cos | -sin]  (n_fft, 2*n_freqs).
    y = jnp.dot(frames, dft_ref[...], preferred_element_type=jnp.float32)
    re = y[:, :n_freqs]
    im = y[:, n_freqs:]
    power = re * re + im * im                                    # (Bt*F, n_freqs)

    mel = jnp.dot(power, fb_ref[...], preferred_element_type=jnp.float32)  # (Bt*F, n_mels)

    if LOG_MELS:
        feat = jnp.log(mel + 1e-6)
    else:
        db = 10.0 * jnp.log10(jnp.maximum(mel, AMIN))            # db_multiplier = 0
        if Bt == 1:
            # Single spectrogram in this block -> global max is the per-element max.
            feat = jnp.maximum(db, jnp.max(db) - TOP_DB)
        else:
            # top_db clamp must stay per batch element (per spectrogram).
            db3 = db.reshape(Bt, F, n_mels)
            cap = jnp.max(db3, axis=(1, 2), keepdims=True) - TOP_DB
            feat = jnp.maximum(db3, cap).reshape(Bt * F, n_mels)

    out = jnp.dot(feat, dct_ref[...], preferred_element_type=jnp.float32)  # (Bt*F, n_mfcc)

    # Fused output transpose -> (Bt, n_mfcc, n_frames): lane dim is n_frames.
    if Bt == 1:
        out_ref[0] = out.T
    else:
        out_ref[...] = jnp.transpose(out.reshape(Bt, F, n_mfcc), (0, 2, 1))


def _choose_bt(B):
    # Batch-fuse to fill the MXU M dim and amortize per-grid-step overhead, but
    # keep >= 2 grid steps so both v7x TensorCores get work (free on v5e/v6e).
    if B <= 2:
        return 1
    bt = min(B // 2, 64)            # <= 64 elems/step keeps the block well under 1 MiB
    while B % bt:                   # need an exact divisor of B
        bt -= 1
    return max(bt, 1)


@functools.partial(jax.jit, static_argnames=())
def mfcc(x):
    B, T = x.shape
    n_freqs = N_FFT // 2 + 1
    pad = N_FFT // 2
    xp = jnp.pad(x, ((0, 0), (pad, pad)), mode="reflect") if CENTER else x
    Tp = xp.shape[1]
    F = 1 + (Tp - N_FFT) // HOP
    xp3 = xp[:, None, :].astype(jnp.float32)                     # (B, 1, Tp)

    # Compile-time constant matrices (window folded into the DFT).
    win = _hann_window(N_FFT)
    n = jnp.arange(N_FFT, dtype=jnp.float32)[:, None]
    k = jnp.arange(n_freqs, dtype=jnp.float32)[None, :]
    ang = 2.0 * jnp.pi * n * k / N_FFT
    dft = jnp.concatenate(
        [jnp.cos(ang) * win[:, None], -jnp.sin(ang) * win[:, None]], axis=1
    ).astype(jnp.float32)                                        # (n_fft, 2*n_freqs)
    fb = _mel_fbanks(n_freqs, 0.0, SAMPLE_RATE / 2.0, N_MELS, SAMPLE_RATE)
    dct = _dct_matrix(N_MFCC, N_MELS)                            # (n_mels, n_mfcc)

    Bt = _choose_bt(B)

    out = pl.pallas_call(
        mfcc_kernel,
        out_shape=jax.ShapeDtypeStruct((B, N_MFCC, F), jnp.float32),
        grid_spec=pltpu.PrefetchScalarGridSpec(
            num_scalar_prefetch=0,
            grid=(B // Bt,),
            in_specs=[
                pl.BlockSpec((Bt, 1, Tp), lambda b: (b, 0, 0)),
                # Constant weights: grid-invariant index maps -> stay VMEM-resident.
                pl.BlockSpec((N_FFT, 2 * n_freqs), lambda b: (0, 0)),
                pl.BlockSpec((n_freqs, N_MELS), lambda b: (0, 0)),
                pl.BlockSpec((N_MELS, N_MFCC), lambda b: (0, 0)),
            ],
            out_specs=pl.BlockSpec((Bt, N_MFCC, F), lambda b: (b, 0, 0)),
        ),
        compiler_params=pltpu.CompilerParams(dimension_semantics=("parallel",)),
    )(xp3, dft, fb, dct)
    return out                                                   # (B, n_mfcc, n_frames)


if __name__ == "__main__":
    key = jax.random.PRNGKey(0)
    x = jax.random.normal(key, (2, 256), dtype=jnp.float32)      # (batch, time)
    y = mfcc(x)
    jax.block_until_ready(y)
    assert y.shape == (2, N_MFCC, 1 + 256 // HOP), y.shape
    assert bool(jnp.all(jnp.isfinite(y)))
    print("KERNEL_OK")
</pallas_src>

<mosaic_0001>
module attributes {stable_mosaic.version = 11 : i64} {
  func.func @mfcc_kernel(%arg0: i32, %arg1: memref<1x1x320xf32, #tpu.memory_space<vmem>>, %arg2: memref<64x66xf32, #tpu.memory_space<vmem>>, %arg3: memref<33x16xf32, #tpu.memory_space<vmem>>, %arg4: memref<16x8xf32, #tpu.memory_space<vmem>>, %arg5: memref<1x8x17xf32, #tpu.memory_space<vmem>>) attributes {dimension_semantics = [#tpu.dimension_semantics<parallel>], iteration_bounds = array<i64: 2>, scalar_prefetch = 0 : i64, scratch_operands = 0 : i64, tpu.core_type = #tpu.core_type<tc>, window_params = [{transform_indices = @transform_0, window_bounds = array<i64: 1, 1, 320>}, {pipeline_mode = #tpu.pipeline_mode<synchronous>, transform_indices = @transform_1, window_bounds = array<i64: 64, 66>}, {pipeline_mode = #tpu.pipeline_mode<synchronous>, transform_indices = @transform_2, window_bounds = array<i64: 33, 16>}, {pipeline_mode = #tpu.pipeline_mode<synchronous>, transform_indices = @transform_3, window_bounds = array<i64: 16, 8>}, {transform_indices = @transform_4, window_bounds = array<i64: 1, 8, 17>}]} {
    %c0 = arith.constant 0 : index
    %c0_0 = arith.constant 0 : index
    %c0_1 = arith.constant 0 : index
    %0 = vector.load %arg1[%c0, %c0_0, %c0_1] : memref<1x1x320xf32, #tpu.memory_space<vmem>>, vector<1x1x320xf32>
    %1 = vector.shape_cast %0 : vector<1x1x320xf32> to vector<1x320xf32>
    %2 = vector.extract_strided_slice %1 {offsets = [0, 0], sizes = [1, 64], strides = [1, 1]} : vector<1x320xf32> to vector<1x64xf32>
    %3 = vector.extract_strided_slice %1 {offsets = [0, 16], sizes = [1, 64], strides = [1, 1]} : vector<1x320xf32> to vector<1x64xf32>
    %4 = vector.extract_strided_slice %1 {offsets = [0, 32], sizes = [1, 64], strides = [1, 1]} : vector<1x320xf32> to vector<1x64xf32>
    %5 = vector.extract_strided_slice %1 {offsets = [0, 48], sizes = [1, 64], strides = [1, 1]} : vector<1x320xf32> to vector<1x64xf32>
    %6 = vector.extract_strided_slice %1 {offsets = [0, 64], sizes = [1, 64], strides = [1, 1]} : vector<1x320xf32> to vector<1x64xf32>
    %7 = vector.extract_strided_slice %1 {offsets = [0, 80], sizes = [1, 64], strides = [1, 1]} : vector<1x320xf32> to vector<1x64xf32>
    %8 = vector.extract_strided_slice %1 {offsets = [0, 96], sizes = [1, 64], strides = [1, 1]} : vector<1x320xf32> to vector<1x64xf32>
    %9 = vector.extract_strided_slice %1 {offsets = [0, 112], sizes = [1, 64], strides = [1, 1]} : vector<1x320xf32> to vector<1x64xf32>
    %10 = vector.extract_strided_slice %1 {offsets = [0, 128], sizes = [1, 64], strides = [1, 1]} : vector<1x320xf32> to vector<1x64xf32>
    %11 = vector.extract_strided_slice %1 {offsets = [0, 144], sizes = [1, 64], strides = [1, 1]} : vector<1x320xf32> to vector<1x64xf32>
    %12 = vector.extract_strided_slice %1 {offsets = [0, 160], sizes = [1, 64], strides = [1, 1]} : vector<1x320xf32> to vector<1x64xf32>
    %13 = vector.extract_strided_slice %1 {offsets = [0, 176], sizes = [1, 64], strides = [1, 1]} : vector<1x320xf32> to vector<1x64xf32>
    %14 = vector.extract_strided_slice %1 {offsets = [0, 192], sizes = [1, 64], strides = [1, 1]} : vector<1x320xf32> to vector<1x64xf32>
    %15 = vector.extract_strided_slice %1 {offsets = [0, 208], sizes = [1, 64], strides = [1, 1]} : vector<1x320xf32> to vector<1x64xf32>
    %16 = vector.extract_strided_slice %1 {offsets = [0, 224], sizes = [1, 64], strides = [1, 1]} : vector<1x320xf32> to vector<1x64xf32>
    %17 = vector.extract_strided_slice %1 {offsets = [0, 240], sizes = [1, 64], strides = [1, 1]} : vector<1x320xf32> to vector<1x64xf32>
    %18 = vector.extract_strided_slice %1 {offsets = [0, 256], sizes = [1, 64], strides = [1, 1]} : vector<1x320xf32> to vector<1x64xf32>
    %19 = tpu.concatenate %2, %3, %4, %5, %6, %7, %8, %9, %10, %11, %12, %13, %14, %15, %16, %17 in 0 : vector<1x64xf32>, vector<1x64xf32>, vector<1x64xf32>, vector<1x64xf32>, vector<1x64xf32>, vector<1x64xf32>, vector<1x64xf32>, vector<1x64xf32>, vector<1x64xf32>, vector<1x64xf32>, vector<1x64xf32>, vector<1x64xf32>, vector<1x64xf32>, vector<1x64xf32>, vector<1x64xf32>, vector<1x64xf32> -> vector<16x64xf32>
    %20 = tpu.concatenate %19, %18 in 0 : vector<16x64xf32>, vector<1x64xf32> -> vector<17x64xf32>
    %c0_2 = arith.constant 0 : index
    %c0_3 = arith.constant 0 : index
    %21 = vector.load %arg2[%c0_2, %c0_3] : memref<64x66xf32, #tpu.memory_space<vmem>>, vector<64x66xf32>
    %cst = arith.constant dense<0.000000e+00> : vector<17x66xf32>
    %22 = tpu.matmul %20, %21, %cst {dimension_numbers = #tpu.dot_dimension_numbers<[1], [0], [0], [1], [0, 0, 1, 1], [], []>} : vector<17x64xf32>, vector<64x66xf32>, vector<17x66xf32> -> vector<17x66xf32>
    %23 = vector.extract_strided_slice %22 {offsets = [0, 0], sizes = [17, 33], strides = [1, 1]} : vector<17x66xf32> to vector<17x33xf32>
    %24 = vector.extract_strided_slice %22 {offsets = [0, 33], sizes = [17, 33], strides = [1, 1]} : vector<17x66xf32> to vector<17x33xf32>
    %25 = arith.mulf %23, %23 : vector<17x33xf32>
    %26 = arith.mulf %24, %24 : vector<17x33xf32>
    %27 = arith.addf %25, %26 : vector<17x33xf32>
    %c0_4 = arith.constant 0 : index
    %c0_5 = arith.constant 0 : index
    %28 = vector.load %arg3[%c0_4, %c0_5] : memref<33x16xf32, #tpu.memory_space<vmem>>, vector<33x16xf32>
    %cst_6 = arith.constant dense<0.000000e+00> : vector<17x16xf32>
    %29 = tpu.matmul %27, %28, %cst_6 {dimension_numbers = #tpu.dot_dimension_numbers<[1], [0], [0], [1], [0, 0, 1, 1], [], []>} : vector<17x33xf32>, vector<33x16xf32>, vector<17x16xf32> -> vector<17x16xf32>
    %cst_7 = arith.constant 1.000000e-10 : f32
    %30 = vector.broadcast %cst_7 : f32 to vector<17x16xf32>
    %31 = arith.maximumf %29, %30 : vector<17x16xf32>
    %32 = math.log %31 : vector<17x16xf32>
    %cst_8 = arith.constant 0.434294492 : f32
    %33 = vector.broadcast %cst_8 : f32 to vector<17x16xf32>
    %34 = arith.mulf %32, %33 : vector<17x16xf32>
    %cst_9 = arith.constant 1.000000e+01 : f32
    %35 = vector.broadcast %cst_9 : f32 to vector<17x16xf32>
    %36 = arith.mulf %35, %34 : vector<17x16xf32>
    %37 = vector.shape_cast %36 : vector<17x16xf32> to vector<1x17x16xf32>
    %cst_10 = arith.constant dense<0xFF800000> : vector<1xf32>
    %38 = vector.multi_reduction <maximumf>, %37, %cst_10 [1, 2] : vector<1x17x16xf32> to vector<1xf32>
    %39 = vector.shape_cast %38 : vector<1xf32> to vector<1x1x1xf32>
    %40 = vector.extract %39[0, 0, 0] : f32 from vector<1x1x1xf32>
    %cst_11 = arith.constant 8.000000e+01 : f32
    %41 = arith.subf %40, %cst_11 : f32
    %42 = vector.broadcast %41 : f32 to vector<17x16xf32>
    %43 = arith.maximumf %36, %42 : vector<17x16xf32>
    %c0_12 = arith.constant 0 : index
    %c0_13 = arith.constant 0 : index
    %44 = vector.load %arg4[%c0_12, %c0_13] : memref<16x8xf32, #tpu.memory_space<vmem>>, vector<16x8xf32>
    %cst_14 = arith.constant dense<0.000000e+00> : vector<17x8xf32>
    %45 = tpu.matmul %43, %44, %cst_14 {dimension_numbers = #tpu.dot_dimension_numbers<[1], [0], [0], [1], [0, 0, 1, 1], [], []>} : vector<17x16xf32>, vector<16x8xf32>, vector<17x8xf32> -> vector<17x8xf32>
    %46 = tpu.transpose %45, [1, 0] : vector<17x8xf32> -> vector<8x17xf32>
    %c0_15 = arith.constant 0 : index
    %c0_16 = arith.constant 0 : index
    %c0_17 = arith.constant 0 : index
    %47 = vector.load %arg5[%c0_15, %c0_16, %c0_17] : memref<1x8x17xf32, #tpu.memory_space<vmem>>, vector<1x8x17xf32>
    %48 = vector.shape_cast %47 : vector<1x8x17xf32> to vector<8x17xf32>
    %49 = vector.shape_cast %46 : vector<8x17xf32> to vector<1x8x17xf32>
    tpu.vector_store %arg5[%c0_15, %c0_16, %c0_17], %49 {strides = array<i32>} : memref<1x8x17xf32, #tpu.memory_space<vmem>>, vector<1x8x17xf32>,
    return
  }
  func.func @transform_0(%arg0: i32) -> (i32, i32, i32) {
    %c0_i32 = arith.constant 0 : i32
    %c0_i32_0 = arith.constant 0 : i32
    %c0_i32_1 = arith.constant 0 : i32
    return %arg0, %c0_i32, %c0_i32_0 : i32, i32, i32
  }
  func.func @transform_1(%arg0: i32) -> (i32, i32) {
    %c0_i32 = arith.constant 0 : i32
    %c0_i32_0 = arith.constant 0 : i32
    %c0_i32_1 = arith.constant 0 : i32
    return %c0_i32, %c0_i32_0 : i32, i32
  }
  func.func @transform_2(%arg0: i32) -> (i32, i32) {
    %c0_i32 = arith.constant 0 : i32
    %c0_i32_0 = arith.constant 0 : i32
    %c0_i32_1 = arith.constant 0 : i32
    return %c0_i32, %c0_i32_0 : i32, i32
  }
  func.func @transform_3(%arg0: i32) -> (i32, i32) {
    %c0_i32 = arith.constant 0 : i32
    %c0_i32_0 = arith.constant 0 : i32
    %c0_i32_1 = arith.constant 0 : i32
    return %c0_i32, %c0_i32_0 : i32, i32
  }
  func.func @transform_4(%arg0: i32) -> (i32, i32, i32) {
    %c0_i32 = arith.constant 0 : i32
    %c0_i32_0 = arith.constant 0 : i32
    %c0_i32_1 = arith.constant 0 : i32
    return %arg0, %c0_i32, %c0_i32_0 : i32, i32, i32
  }
}

</mosaic_0001>

<llo_original>
// kernel: mfcc.1
$region0: #{mfcc.1}
  #allocation0 [shape = 'u32[]', space=smem, size = 0x4, offset = 0x4, fixed_abs, tag = 'smem constant byte address 0x4 - core index']
  #allocation1 [shape = 'u32[144,128]{1,0:T(1,128)}', space=vmem, size = 0x12000, scoped, tag = 'internal scratch']
  %s0 = inlined_call_operand.vmem [shape: f32[2,1,320], index: 0, kind: input, shape index: {}]
  %s1 = inlined_call_operand.vmem [shape: f32[64,66], index: 1, kind: input, shape index: {}]
  %s2 = inlined_call_operand.vmem [shape: f32[33,16], index: 2, kind: input, shape index: {}]
  %s3 = inlined_call_operand.vmem [shape: f32[16,8], index: 3, kind: input, shape index: {}]
  %s4 = inlined_call_operand.hbm [shape: f32[2,8,17], index: 4, kind: output, shape index: {}]
  %s5 = sld [smem:[#allocation0]]
  $region49: #{mfcc.1} parent=0
    _
  %s7 = ssub.s32 1, %s5
  %s8 = scalar_select 0, %s7, %s5
  $region1: #{mfcc.1} parent=0
    #allocation2 [shape = 'u8[8192]{0}', space=vmem, size = 0x2000, scoped, tag = 'output window, operand 0']
    #allocation3 [shape = 's32[2]{0}', space=sflag, size = 0x8, scoped, tag = 'scoped memory for mfcc.1']
    %9 = vsyncpa [#allocation3], 0
    %s10 = scalar_lea.sflag [#allocation3], 1
    %11 = vsyncpa %s10, 0
    loop: start=0, step=1, limit=4
    $region2: #{mfcc.1} parent=1 // loop_pre_header
      _
    $region3: #{mfcc.1} parent=1 // loop_header
      %s13 = sphi 0, %s17
      %p14 = scmp.ge.s32.totalorder %s13, 4
      %s23 = sphi 0, %s25
      %s26 = sphi 0, %s23
      %s27 = sphi 0, %s26
      %s43 = sphi 0, %s27
      %s47 = sphi 0, %s47
      %s49 = sphi 0, %s47
      %s50 = sphi 0, %s49
      %s64 = sphi 0, %s50
      %s68 = sphi 0, %s68
      %s70 = sphi 0, %s68
      %s71 = sphi 0, %s70
      %s85 = sphi 0, %s71
      %s89 = sphi 0, %s89
      %s91 = sphi 0, %s89
      %s92 = sphi 0, %s91
      %s106 = sphi 0, %s92
      %s112 = sphi 0, %s114
      %s115 = sphi 0, %s112
      %s116 = sphi 0, %s115
      %s132 = sphi 0, %s116
    $region4: #{mfcc.1} parent=1 // loop_header_branch
      %16 = sbr.rel (%p14) target = $region8
    $region5: #{mfcc.1} parent=1 // loop_body
      %s18 = ssub.s32 %s13, 1
      %s19 = ssub.s32 %s13, 2
      %s20 = sadd.s32 %s13, 1
      %s21 = ssub.s32 %s13, %s20
      %p22 = scmp.eq.s32.totalorder %s21, 0
      %s24 = sadd.s32 %s23, 1
      %s25 = scalar_select %p22, %s23, %s24
      %p28 = pneg %p22
      %p29 = scmp.eq.s32.totalorder %s13, 1
      %p30 = por %p28, %p29
      %p31 = scmp.ne.s32.totalorder %s23, %s26
      %p32 = scmp.eq.s32.totalorder %s13, 0
      %p33 = por %p31, %p32
      %p34 = scmp.ne.s32.totalorder %s23, %s26
      %p35 = scmp.eq.s32.totalorder %s18, 1
      %p36 = por %p34, %p35
      %p37 = scmp.ne.s32.totalorder %s26, %s27
      %p38 = scmp.eq.s32.totalorder %s18, 0
      %p39 = por %p37, %p38
      %p40 = scmp.ne.s32.totalorder %s26, %s27
      %p41 = scmp.eq.s32.totalorder %s19, 1
      %p42 = por %p40, %p41
      %p44 = scmp.ne.s32.totalorder %s27, %s43
      %p45 = scmp.eq.s32.totalorder %s19, 0
      %p46 = por %p44, %p45
      %s48 = sadd.s32 %s47, 1
      %p51 = scmp.eq.s32.totalorder %s13, 1
      %p52 = scmp.ne.s32.totalorder %s47, %s49
      %p53 = scmp.eq.s32.totalorder %s13, 0
      %p54 = por %p52, %p53
      %p55 = scmp.ne.s32.totalorder %s47, %s49
      %p56 = scmp.eq.s32.totalorder %s18, 1
      %p57 = por %p55, %p56
      %p58 = scmp.ne.s32.totalorder %s49, %s50
      %p59 = scmp.eq.s32.totalorder %s18, 0
      %p60 = por %p58, %p59
      %p61 = scmp.ne.s32.totalorder %s49, %s50
      %p62 = scmp.eq.s32.totalorder %s19, 1
      %p63 = por %p61, %p62
      %p65 = scmp.ne.s32.totalorder %s50, %s64
      %p66 = scmp.eq.s32.totalorder %s19, 0
      %p67 = por %p65, %p66
      %s69 = sadd.s32 %s68, 1
      %p72 = scmp.eq.s32.totalorder %s13, 1
      %p73 = scmp.ne.s32.totalorder %s68, %s70
      %p74 = scmp.eq.s32.totalorder %s13, 0
      %p75 = por %p73, %p74
      %p76 = scmp.ne.s32.totalorder %s68, %s70
      %p77 = scmp.eq.s32.totalorder %s18, 1
      %p78 = por %p76, %p77
      %p79 = scmp.ne.s32.totalorder %s70, %s71
      %p80 = scmp.eq.s32.totalorder %s18, 0
      %p81 = por %p79, %p80
      %p82 = scmp.ne.s32.totalorder %s70, %s71
      %p83 = scmp.eq.s32.totalorder %s19, 1
      %p84 = por %p82, %p83
      %p86 = scmp.ne.s32.totalorder %s71, %s85
      %p87 = scmp.eq.s32.totalorder %s19, 0
      %p88 = por %p86, %p87
      %s90 = sadd.s32 %s89, 1
      %p93 = scmp.eq.s32.totalorder %s13, 1
      %p94 = scmp.ne.s32.totalorder %s89, %s91
      %p95 = scmp.eq.s32.totalorder %s13, 0
      %p96 = por %p94, %p95
      %p97 = scmp.ne.s32.totalorder %s89, %s91
      %p98 = scmp.eq.s32.totalorder %s18, 1
      %p99 = por %p97, %p98
      %p100 = scmp.ne.s32.totalorder %s91, %s92
      %p101 = scmp.eq.s32.totalorder %s18, 0
      %p102 = por %p100, %p101
      %p103 = scmp.ne.s32.totalorder %s91, %s92
      %p104 = scmp.eq.s32.totalorder %s19, 1
      %p105 = por %p103, %p104
      %p107 = scmp.ne.s32.totalorder %s92, %s106
      %p108 = scmp.eq.s32.totalorder %s19, 0
      %p109 = por %p107, %p108
      %s110 = ssub.s32 %s13, %s20
      %p111 = scmp.eq.s32.totalorder %s110, 0
      %s113 = sadd.s32 %s112, 1
      %s114 = scalar_select %p111, %s112, %s113
      %p117 = pneg %p111
      %p118 = scmp.eq.s32.totalorder %s13, 1
      %p119 = por %p117, %p118
      %p120 = scmp.ne.s32.totalorder %s112, %s115
      %p121 = scmp.eq.s32.totalorder %s13, 0
      %p122 = por %p120, %p121
      %p123 = scmp.ne.s32.totalorder %s112, %s115
      %p124 = scmp.eq.s32.totalorder %s18, 1
      %p125 = por %p123, %p124
      %p126 = scmp.ne.s32.totalorder %s115, %s116
      %p127 = scmp.eq.s32.totalorder %s18, 0
      %p128 = por %p126, %p127
      %p129 = scmp.ne.s32.totalorder %s115, %s116
      %p130 = scmp.eq.s32.totalorder %s19, 1
      %p131 = por %p129, %p130
      %p133 = scmp.ne.s32.totalorder %s116, %s132
      %p134 = scmp.eq.s32.totalorder %s19, 0
      %p135 = por %p133, %p134
      %p136 = scmp.le.s32.totalorder 1, %s13
      %p137 = scmp.lt.s32.totalorder %s13, 3
      %p138 = pnand %p136, %p137
      %p139 = pneg %p138
      // Predicated region
      $region9: #{mfcc.1} parent=5 // pred_check
        _
      $region10: #{mfcc.1} parent=5 // pred_check_branch
        %141 = sbr.rel (%p138) target = $region12
      $region11: #{mfcc.1} parent=5 // pred_region
        %s142 = ssub.s32 %s13, 1
        // Predicated region
        $region13: #{mfcc.1} parent=11 // pred_check
          %p143 = pneg %p60
        $region14: #{mfcc.1} parent=11 // pred_check_branch
          %145 = sbr.rel (%p143) target = $region16
        $region15: #{mfcc.1} parent=11 // pred_region
          _
        $region16: #{mfcc.1} parent=11 // pred_fallthru
          _
        // Predicated region
        $region17: #{mfcc.1} parent=11 // pred_check
          %p146 = pneg %p81
        $region18: #{mfcc.1} parent=11 // pred_check_branch
          %148 = sbr.rel (%p146) target = $region20
        $region19: #{mfcc.1} parent=11 // pred_region
          _
        $region20: #{mfcc.1} parent=11 // pred_fallthru
          _
        // Predicated region
        $region21: #{mfcc.1} parent=11 // pred_check
          %p149 = pneg %p102
        $region22: #{mfcc.1} parent=11 // pred_check_branch
          %151 = sbr.rel (%p149) target = $region24
        $region23: #{mfcc.1} parent=11 // pred_region
          _
        $region24: #{mfcc.1} parent=11 // pred_fallthru
          _
      $region12: #{mfcc.1} parent=5 // pred_fallthru
        _
      %p152 = scmp.lt.s32.totalorder %s13, 2
      // Predicated region
      $region25: #{mfcc.1} parent=5 // pred_check
        %p153 = pneg %p152
      $region26: #{mfcc.1} parent=5 // pred_check_branch
        %155 = sbr.rel (%p153) target = $region28
      $region27: #{mfcc.1} parent=5 // pred_region
        // Predicated region
        $region29: #{mfcc.1} parent=27 // pred_check
          %p156 = pneg %p33
        $region30: #{mfcc.1} parent=27 // pred_check_branch
          %158 = sbr.rel (%p156) target = $region32
        $region31: #{mfcc.1} parent=27 // pred_region
          %p159 = scmp.lt.s32.totalorder %s13, 1
          %s160 = scalar_select %p159, %s13, 1
          %s161 = smul.addr %s160, 3
          %s162 = scalar_lea.vmem %s0, %s161
        $region32: #{mfcc.1} parent=27 // pred_fallthru
          _
      $region28: #{mfcc.1} parent=5 // pred_fallthru
        _
      %p163 = scmp.le.s32.totalorder 1, %s13
      %p164 = scmp.lt.s32.totalorder %s13, 3
      %p165 = pnand %p163, %p164
      %p166 = pneg %p165
      // Predicated region
      $region33: #{mfcc.1} parent=5 // pred_check
        _
      $region34: #{mfcc.1} parent=5 // pred_check_branch
        %168 = sbr.rel (%p165) target = $region36
      $region35: #{mfcc.1} parent=5 // pred_region
        %s169 = ssub.s32 %s13, 1
        %p170 = scmp.lt.s32.totalorder %s18, 1
        %s171 = scalar_select %p170, %s18, 1
        %s172 = smul.addr %s171, 3
        %s173 = scalar_lea.vmem %s0, %s172
        %p174 = pneg %p39
        %p175 = pneg %p36
        %p176 = pneg %p60
        %p177 = pneg %p57
        %p178 = pneg %p81
        %p179 = pneg %p78
        %p180 = pneg %p102
        %p181 = pneg %p99
        %p182 = pneg %p128
        %p183 = pneg %p125
        %s184 = sand.u32 %s115, 1
        %s185 = scalar_lea.sflag [#allocation3], %s184
        %s186 = sand.u32 %s115, 1
        %s187 = smul.addr %s186, 8
        %s188 = scalar_lea.vmem [#allocation2], %s187
        %p189 = scmp.lt.s32.totalorder %s18, 1
        %s190 = scalar_select %p189, %s18, 1
        %s191 = smul.addr %s190, 3
        %s192 = scalar_lea.vmem %s0, %s191
        %v193 = vld [vmem:[%s192] sm:$0x7]
        %v195 = vlaneseq
        %v196 = vshrl.u32 %v195, 7
        %v197 = vsub.s32 0, %v196
        %v198 = vrot.slane %v193, %v197
        %199 = vrot.lane.b32.xlu0 %v198, 112
        %v200 = vpop.permute.xlu0 %199
        %202 = vrot.lane.b32.xlu0 %v198, 96
        %v203 = vpop.permute.xlu0 %202
        %205 = vrot.lane.b32.xlu0 %v198, 80
        %v206 = vpop.permute.xlu0 %205
        %208 = vrot.lane.b32.xlu0 %v198, 64
        %v209 = vpop.permute.xlu0 %208
        %v211 = vlaneseq
        %v212 = vshrl.u32 %v211, 7
        %v213 = vsub.s32 1, %v212
        %v214 = vrot.slane %v193, %v213
        %215 = vrot.lane.b32.xlu0 %v198, 48
        %v216 = vpop.permute.xlu0 %215
        %217 = vrot.lane.b32.xlu0 %v214, 48
        %v218 = vpop.permute.xlu0 %217
        %vm219 = vcmask 392192
        %v220 = vsel %vm219, %v216, %v218
        %222 = vrot.lane.b32.xlu0 %v198, 32
        %v223 = vpop.permute.xlu0 %222
        %224 = vrot.lane.b32.xlu0 %v214, 32
        %v225 = vpop.permute.xlu0 %224
        %vm226 = vcmask 261120
        %v227 = vsel %vm226, %v223, %v225
        %229 = vrot.lane.b32.xlu0 %v198, 16
        %v230 = vpop.permute.xlu0 %229
        %231 = vrot.lane.b32.xlu0 %v214, 16
        %v232 = vpop.permute.xlu0 %231
        %vm233 = vcmask 130048
        %v234 = vsel %vm233, %v230, %v232
        %237 = vrot.lane.b32.xlu0 %v214, 112
        %v238 = vpop.permute.xlu0 %237
        %240 = vrot.lane.b32.xlu0 %v214, 96
        %v241 = vpop.permute.xlu0 %240
        %243 = vrot.lane.b32.xlu0 %v214, 80
        %v244 = vpop.permute.xlu0 %243
        %246 = vrot.lane.b32.xlu0 %v214, 64
        %v247 = vpop.permute.xlu0 %246
        %v249 = vlaneseq
        %v250 = vshrl.u32 %v249, 7
        %v251 = vsub.s32 2, %v250
        %v252 = vrot.slane %v193, %v251
        %253 = vrot.lane.b32.xlu0 %v252, 48
        %v254 = vpop.permute.xlu0 %253
        %v255 = vsel %vm219, %v218, %v254
        %257 = vrot.lane.b32.xlu0 %v252, 32
        %v258 = vpop.permute.xlu0 %257
        %v259 = vsel %vm226, %v225, %v258
        %261 = vrot.lane.b32.xlu0 %v252, 16
        %v262 = vpop.permute.xlu0 %261
        %v263 = vsel %vm233, %v232, %v262
        %vm265 = vcmask 1040384
        %v266 = vsel %vm265, %v193, %v200
        %vm267 = vcmask 1041408
        %v268 = vsel %vm267, %v266, %v203
        %vm269 = vcmask 1042432
        %v270 = vsel %vm269, %v268, %v206
        %vm271 = vcmask 1043456
        %v272 = vsel %vm271, %v270, %v209
        %vm273 = vcmask 1044480
        %v274 = vsel %vm273, %v272, %v220
        %vm275 = vcmask 1045504
        %v276 = vsel %vm275, %v274, %v227
        %vm277 = vcmask 1046528
        %v278 = vsel %vm277, %v276, %v234
        %v279 = vsel %vm265, %v214, %v238
        %v280 = vsel %vm267, %v279, %v241
        %v281 = vsel %vm269, %v280, %v244
        %v282 = vsel %vm271, %v281, %v247
        %v283 = vsel %vm273, %v282, %v255
        %v284 = vsel %vm275, %v283, %v259
        %v285 = vsel %vm277, %v284, %v263
        %v286 = vld [vmem:[%s1] sm:$0xff]
        %v287 = vld [vmem:[%s1 + $0x8] sm:$0xff]
        %v288 = vld [vmem:[%s1 + $0x10] sm:$0xff]
        %v289 = vld [vmem:[%s1 + $0x18] sm:$0xff]
        %v290 = vld [vmem:[%s1 + $0x20] sm:$0xff]
        %v291 = vld [vmem:[%s1 + $0x28] sm:$0xff]
        %v292 = vld [vmem:[%s1 + $0x30] sm:$0xff]
        %v293 = vld [vmem:[%s1 + $0x38] sm:$0xff]
        %vm294 = vcmask 523264
        %v296 = vsel %vm294, %v278, 0
        %v299 = vsel %vm294, %v285, 0
        %v301 = vsel %vm294, %v252, 0
        %303 = vmatprep.subr.mxu0 0.0
        %304 = vmatpush1.msra.mxu0 %v286
        %305 = vmatprep.subr.mxu0 0.0
        %306 = vmatpush1.msra.mxu0 %v287
        %307 = vmatprep.subr.mxu0 0.0
        %308 = vmatpush1.msra.mxu0 %v288
        %309 = vmatprep.subr.mxu0 0.0
        %310 = vmatpush1.msra.mxu0 %v289
        %311 = vmatprep.subr.mxu0 0.0
        %312 = vmatpush1.msra.mxu0 %v290
        %313 = vmatprep.subr.mxu0 0.0
        %314 = vmatpush1.msra.mxu0 %v291
        %315 = vmatprep.subr.mxu0 0.0
        %316 = vmatpush1.msra.mxu0 %v292
        %317 = vmatprep.subr.mxu0 0.0
        %318 = vmatpush1.msra.mxu0 %v293
        %319 = vmatprep.subr.mxu0 0.0
        %320 = vmatpush1.msra.mxu0 0.0
        %321 = vmatprep.subr.mxu0 0.0
        %322 = vmatpush1.msra.mxu0 0.0
        %323 = vmatprep.subr.mxu0 0.0
        %324 = vmatpush1.msra.mxu0 0.0
        %325 = vmatprep.subr.mxu0 0.0
        %326 = vmatpush1.msra.mxu0 0.0
        %327 = vmatprep.subr.mxu0 0.0
        %328 = vmatpush1.msra.mxu0 0.0
        %329 = vmatprep.subr.mxu0 0.0
        %330 = vmatpush1.msra.mxu0 0.0
        %331 = vmatprep.subr.mxu0 0.0
        %332 = vmatpush1.msra.mxu0 0.0
        %333 = vmatprep.subr.mxu0 0.0
        %334 = vmatpush1.msra.mxu0 0.0
        %335 = vmatprep.subr.mxu0 0.0
        %336 = vmatpush1.msra.mxu0 0.0
        %337 = vmatprep.subr.mxu0 0.0
        %338 = vmatpush1.msra.mxu0 0.0
        %339 = vmatprep.subr.mxu0 0.0
        %340 = vmatpush1.msra.mxu0 0.0
        %341 = vmatprep.subr.mxu0 0.0
        %342 = vmatpush1.msra.mxu0 0.0
        %343 = vmatprep.subr.mxu0 0.0
        %344 = vmatpush1.msra.mxu0 0.0
        %345 = vmatprep.subr.mxu0 0.0
        %346 = vmatpush1.msra.mxu0 0.0
        %347 = vmatprep.subr.mxu0 0.0
        %348 = vmatpush1.msra.mxu0 0.0
        %349 = vmatprep.subr.mxu0 0.0
        %350 = vmatpush1.msra.mxu0 0.0
        %351 = vmatprep.subr.mxu0 0.0
        %352 = vmatpush1.msra.mxu0 0.0
        %353 = vmatprep.subr.mxu0 0.0
        %354 = vmatpush1.msra.mxu0 0.0
        %355 = vmatprep.subr.mxu0 0.0
        %356 = vmatpush1.msra.mxu0 0.0
        %357 = vmatprep.subr.mxu0 0.0
        %358 = vmatpush1.msra.mxu0 0.0
        %359 = vmatprep.subr.mxu0 0.0
        %360 = vmatpush1.msra.mxu0 0.0
        %361 = vmatprep.subr.mxu0 0.0
        %362 = vmatpush1.msra.mxu0 0.0
        %363 = vmatprep.subr.mxu0 0.0
        %364 = vmatpush1.msra.mxu0 0.0
        %365 = vmatprep.subr.mxu0 0.0
        %366 = vmatpush1.msra.mxu0 0.0
        %367 = vmatprep.mubr.f32.mxu0 0.0
        %368 = vmatmul.mubr.f32.gmra.mrb[0].mxu0 %v296
        %v369 = vpop.f32.mrb[0].mxu0
        %v370 = vadd.f32 0.0, %v369
        %v371 = vpop.f32.mrb[0].mxu0
        %372 = vmatprep.mubr.f32.mxu0 0.0
        %373 = vmatmul.mubr.f32.gmra.mrb[0].mxu0 %v299
        %v374 = vpop.f32.mrb[0].mxu0
        %v375 = vadd.f32 0.0, %v374
        %v376 = vpop.f32.mrb[0].mxu0
        %377 = vmatprep.mubr.f32.mxu0 0.0
        %378 = vmatmul.mubr.f32.gmra.mrb[0].mxu0 %v301
        %v379 = vpop.f32.mrb[0].mxu0
        %v380 = vadd.f32 0.0, %v379
        %v381 = vpop.f32.mrb[0].mxu0
        %382 = vdwg.mxu0
        %v383 = vmul.f32 %v370, %v370
        %v384 = vmul.f32 %v375, %v375
        %v385 = vmul.f32 %v380, %v380
        %389 = vrot.lane.b32.xlu0 %v383, 95
        %v390 = vpop.permute.xlu0 %389
        %391 = vrot.lane.b32.xlu0 %v384, 95
        %v392 = vpop.permute.xlu0 %391
        %393 = vrot.lane.b32.xlu0 %v385, 95
        %v394 = vpop.permute.xlu0 %393
        %v398 = vadd.f32 %v383, %v390
        %v399 = vadd.f32 %v384, %v392
        %v400 = vadd.f32 %v385, %v394
        %v401 = vld [vmem:[%s2] sm:$0xff]
        %v402 = vld [vmem:[%s2 + $0x8] sm:$0xff]
        %v403 = vld [vmem:[%s2 + $0x10] sm:$0xff]
        %v404 = vld [vmem:[%s2 + $0x18] sm:$0xff]
        %v405 = vld [vmem:[%s2 + $0x20] sm:$0x1]
        %vm406 = vcmask 269312
        %v408 = vsel %vm406, %v398, 0
        %v411 = vsel %vm406, %v399, 0
        %v414 = vsel %vm406, %v400, 0
        %v417 = vsel %vm265, %v405, 0
        %419 = vmatprep.subr.mxu0 0.0
        %420 = vmatpush1.msra.mxu0 %v401
        %421 = vmatprep.subr.mxu0 0.0
        %422 = vmatpush1.msra.mxu0 %v402
        %423 = vmatprep.subr.mxu0 0.0
        %424 = vmatpush1.msra.mxu0 %v403
        %425 = vmatprep.subr.mxu0 0.0
        %426 = vmatpush1.msra.mxu0 %v404
        %427 = vmatprep.subr.mxu0 0.0
        %428 = vmatpush1.msra.mxu0 %v417
        %429 = vmatprep.subr.mxu0 0.0
        %430 = vmatpush1.msra.mxu0 0.0
        %431 = vmatprep.subr.mxu0 0.0
        %432 = vmatpush1.msra.mxu0 0.0
        %433 = vmatprep.subr.mxu0 0.0
        %434 = vmatpush1.msra.mxu0 0.0
        %435 = vmatprep.subr.mxu0 0.0
        %436 = vmatpush1.msra.mxu0 0.0
        %437 = vmatprep.subr.mxu0 0.0
        %438 = vmatpush1.msra.mxu0 0.0
        %439 = vmatprep.subr.mxu0 0.0
        %440 = vmatpush1.msra.mxu0 0.0
        %441 = vmatprep.subr.mxu0 0.0
        %442 = vmatpush1.msra.mxu0 0.0
        %443 = vmatprep.subr.mxu0 0.0
        %444 = vmatpush1.msra.mxu0 0.0
        %445 = vmatprep.subr.mxu0 0.0
        %446 = vmatpush1.msra.mxu0 0.0
        %447 = vmatprep.subr.mxu0 0.0
        %448 = vmatpush1.msra.mxu0 0.0
        %449 = vmatprep.subr.mxu0 0.0
        %450 = vmatpush1.msra.mxu0 0.0
        %451 = vmatprep.subr.mxu0 0.0
        %452 = vmatpush1.msra.mxu0 0.0
        %453 = vmatprep.subr.mxu0 0.0
        %454 = vmatpush1.msra.mxu0 0.0
        %455 = vmatprep.subr.mxu0 0.0
        %456 = vmatpush1.msra.mxu0 0.0
        %457 = vmatprep.subr.mxu0 0.0
        %458 = vmatpush1.msra.mxu0 0.0
        %459 = vmatprep.subr.mxu0 0.0
        %460 = vmatpush1.msra.mxu0 0.0
        %461 = vmatprep.subr.mxu0 0.0
        %462 = vmatpush1.msra.mxu0 0.0
        %463 = vmatprep.subr.mxu0 0.0
        %464 = vmatpush1.msra.mxu0 0.0
        %465 = vmatprep.subr.mxu0 0.0
        %466 = vmatpush1.msra.mxu0 0.0
        %467 = vmatprep.subr.mxu0 0.0
        %468 = vmatpush1.msra.mxu0 0.0
        %469 = vmatprep.subr.mxu0 0.0
        %470 = vmatpush1.msra.mxu0 0.0
        %471 = vmatprep.subr.mxu0 0.0
        %472 = vmatpush1.msra.mxu0 0.0
        %473 = vmatprep.subr.mxu0 0.0
        %474 = vmatpush1.msra.mxu0 0.0
        %475 = vmatprep.subr.mxu0 0.0
        %476 = vmatpush1.msra.mxu0 0.0
        %477 = vmatprep.subr.mxu0 0.0
        %478 = vmatpush1.msra.mxu0 0.0
        %479 = vmatprep.subr.mxu0 0.0
        %480 = vmatpush1.msra.mxu0 0.0
        %481 = vmatprep.subr.mxu0 0.0
        %482 = vmatpush1.msra.mxu0 0.0
        %483 = vmatprep.mubr.f32.mxu0 0.0
        %484 = vmatmul.mubr.f32.gmra.mrb[0].mxu0 %v408
        %v485 = vpop.f32.mrb[0].mxu0
        %v486 = vadd.f32 0.0, %v485
        %v487 = vpop.f32.mrb[0].mxu0
        %488 = vmatprep.mubr.f32.mxu0 0.0
        %489 = vmatmul.mubr.f32.gmra.mrb[0].mxu0 %v411
        %v490 = vpop.f32.mrb[0].mxu0
        %v491 = vadd.f32 0.0, %v490
        %v492 = vpop.f32.mrb[0].mxu0
        %493 = vmatprep.mubr.f32.mxu0 0.0
        %494 = vmatmul.mubr.f32.gmra.mrb[0].mxu0 %v414
        %v495 = vpop.f32.mrb[0].mxu0
        %v496 = vadd.f32 0.0, %v495
        %v497 = vpop.f32.mrb[0].mxu0
        %498 = vdwg.mxu0
        %v499 = vmax.f32 %v486, 1e-10
        %v500 = vmax.f32 %v491, 1e-10
        %v501 = vmax.f32 %v496, 1e-10
        %v502 = vlog2.pop %v499
        %v503 = vmul.f32 %v502, 0.6931472
        %v504 = vlog2.pop %v500
        %v505 = vmul.f32 %v504, 0.6931472
        %v506 = vlog2.pop %v501
        %v507 = vmul.f32 %v506, 0.6931472
        %v508 = vmul.f32 %v503, 0.4342945
        %v509 = vmul.f32 %v505, 0.4342945
        %v510 = vmul.f32 %v507, 0.4342945
        %v511 = vmul.f32 %v508, 10.0
        %v512 = vmul.f32 %v509, 10.0
        %v513 = vmul.f32 %v510, 10.0
        %v514 = vsel %vm233, %v511, -inf
        %v515 = vsel %vm233, %v512, -inf
        %vm516 = vcmask 122880
        %v517 = vsel %vm516, %v513, -inf
        %v518 = vmax.f32 %v514, %v515
        %v519 = vmax.f32 %v518, %v517
        %520 = vmax.xlane.f32.xlu0 %v519
        %v521 = vpop.xlane.xlu0 %520
        %v522 = vrot.slane %v521, 4
        %v523 = vmax.f32 %v521, %v522
        %v524 = vrot.slane %v523, 2
        %v525 = vmax.f32 %v523, %v524
        %v526 = vrot.slane %v525, 1
        %v527 = vmax.f32 %v525, %v526
        %s528 = vtos %v527
        %s529 = ssub.f32 %s528, 80.0
        %v530 = vstv %s529
        %v531 = vmax.f32 %v511, %v530
        %v532 = vmax.f32 %v512, %v530
        %v533 = vmax.f32 %v513, %v530
        %v534 = vld [vmem:[%s3] sm:$0xff]
        %v535 = vld [vmem:[%s3 + $0x8] sm:$0xff]
        %v537 = vsel %vm233, %v531, 0
        %v540 = vsel %vm233, %v532, 0
        %v543 = vsel %vm233, %v533, 0
        %545 = vmatprep.subr.mxu0 0.0
        %546 = vmatpush1.msra.mxu0 %v534
        %547 = vmatprep.subr.mxu0 0.0
        %548 = vmatpush1.msra.mxu0 %v535
        %549 = vmatprep.subr.mxu0 0.0
        %550 = vmatpush1.msra.mxu0 0.0
        %551 = vmatprep.subr.mxu0 0.0
        %552 = vmatpush1.msra.mxu0 0.0
        %553 = vmatprep.subr.mxu0 0.0
        %554 = vmatpush1.msra.mxu0 0.0
        %555 = vmatprep.subr.mxu0 0.0
        %556 = vmatpush1.msra.mxu0 0.0
        %557 = vmatprep.subr.mxu0 0.0
        %558 = vmatpush1.msra.mxu0 0.0
        %559 = vmatprep.subr.mxu0 0.0
        %560 = vmatpush1.msra.mxu0 0.0
        %561 = vmatprep.subr.mxu0 0.0
        %562 = vmatpush1.msra.mxu0 0.0
        %563 = vmatprep.subr.mxu0 0.0
        %564 = vmatpush1.msra.mxu0 0.0
        %565 = vmatprep.subr.mxu0 0.0
        %566 = vmatpush1.msra.mxu0 0.0
        %567 = vmatprep.subr.mxu0 0.0
        %568 = vmatpush1.msra.mxu0 0.0
        %569 = vmatprep.subr.mxu0 0.0
        %570 = vmatpush1.msra.mxu0 0.0
        %571 = vmatprep.subr.mxu0 0.0
        %572 = vmatpush1.msra.mxu0 0.0
        %573 = vmatprep.subr.mxu0 0.0
        %574 = vmatpush1.msra.mxu0 0.0
        %575 = vmatprep.subr.mxu0 0.0
        %576 = vmatpush1.msra.mxu0 0.0
        %577 = vmatprep.subr.mxu0 0.0
        %578 = vmatpush1.msra.mxu0 0.0
        %579 = vmatprep.subr.mxu0 0.0
        %580 = vmatpush1.msra.mxu0 0.0
        %581 = vmatprep.subr.mxu0 0.0
        %582 = vmatpush1.msra.mxu0 0.0
        %583 = vmatprep.subr.mxu0 0.0
        %584 = vmatpush1.msra.mxu0 0.0
        %585 = vmatprep.subr.mxu0 0.0
        %586 = vmatpush1.msra.mxu0 0.0
        %587 = vmatprep.subr.mxu0 0.0
        %588 = vmatpush1.msra.mxu0 0.0
        %589 = vmatprep.subr.mxu0 0.0
        %590 = vmatpush1.msra.mxu0 0.0
        %591 = vmatprep.subr.mxu0 0.0
        %592 = vmatpush1.msra.mxu0 0.0
        %593 = vmatprep.subr.mxu0 0.0
        %594 = vmatpush1.msra.mxu0 0.0
        %595 = vmatprep.subr.mxu0 0.0
        %596 = vmatpush1.msra.mxu0 0.0
        %597 = vmatprep.subr.mxu0 0.0
        %598 = vmatpush1.msra.mxu0 0.0
        %599 = vmatprep.subr.mxu0 0.0
        %600 = vmatpush1.msra.mxu0 0.0
        %601 = vmatprep.subr.mxu0 0.0
        %602 = vmatpush1.msra.mxu0 0.0
        %603 = vmatprep.subr.mxu0 0.0
        %604 = vmatpush1.msra.mxu0 0.0
        %605 = vmatprep.subr.mxu0 0.0
        %606 = vmatpush1.msra.mxu0 0.0
        %607 = vmatprep.subr.mxu0 0.0
        %608 = vmatpush1.msra.mxu0 0.0
        %609 = vmatprep.mubr.f32.mxu0 0.0
        %610 = vmatmul.mubr.f32.gmra.mrb[0].mxu0 %v537
        %v611 = vpop.f32.mrb[0].mxu0
        %v612 = vadd.f32 0.0, %v611
        %v613 = vpop.f32.mrb[0].mxu0
        %614 = vmatprep.mubr.f32.mxu0 0.0
        %615 = vmatmul.mubr.f32.gmra.mrb[0].mxu0 %v540
        %v616 = vpop.f32.mrb[0].mxu0
        %v617 = vadd.f32 0.0, %v616
        %v618 = vpop.f32.mrb[0].mxu0
        %619 = vmatprep.mubr.f32.mxu0 0.0
        %620 = vmatmul.mubr.f32.gmra.mrb[0].mxu0 %v543
        %v621 = vpop.f32.mrb[0].mxu0
        %v622 = vadd.f32 0.0, %v621
        %v623 = vpop.f32.mrb[0].mxu0
        %624 = vdwg.mxu0
        %625 = vxpose.xlu0.b32.start [1/16] %v612, 128
        %626 = vxpose.xlu0.b32.cont [2/16] %v617, 128
        %627 = vxpose.xlu0.b32.cont [3/16] %v622, 128
        %628 = vxpose.xlu0.b32.cont [4/16] 0.0, 128
        %629 = vxpose.xlu0.b32.cont [5/16] 0.0, 128
        %630 = vxpose.xlu0.b32.cont [6/16] 0.0, 128
        %631 = vxpose.xlu0.b32.cont [7/16] 0.0, 128
        %632 = vxpose.xlu0.b32.cont [8/16] 0.0, 128
        %633 = vxpose.xlu0.b32.cont [9/16] 0.0, 128
        %634 = vxpose.xlu0.b32.cont [10/16] 0.0, 128
        %635 = vxpose.xlu0.b32.cont [11/16] 0.0, 128
        %636 = vxpose.xlu0.b32.cont [12/16] 0.0, 128
        %637 = vxpose.xlu0.b32.cont [13/16] 0.0, 128
        %638 = vxpose.xlu0.b32.cont [14/16] 0.0, 128
        %639 = vxpose.xlu0.b32.cont [15/16] 0.0, 128
        %640 = vxpose.xlu0.b32.end [16/16] 0.0, 128
        %v641 = vpop.trf.xlu0
        %v642 = vpop.trf.xlu0
        %v643 = vpop.trf.xlu0
        %v644 = vpop.trf.xlu0
        %v645 = vpop.trf.xlu0
        %v646 = vpop.trf.xlu0
        %v647 = vpop.trf.xlu0
        %v648 = vpop.trf.xlu0
        %v649 = vpop.trf.xlu0
        %v650 = vpop.trf.xlu0
        %v651 = vpop.trf.xlu0
        %v652 = vpop.trf.xlu0
        %v653 = vpop.trf.xlu0
        %v654 = vpop.trf.xlu0
        %v655 = vpop.trf.xlu0
        %v656 = vpop.trf.xlu0
        %vm657 = vcmask 138240
        %658 = vst.msk [vmem:[%s188] sm:$0xff] %vm657, %v641
        %s659 = sand.u32 %s115, 1
        %s660 = scalar_lea.sflag [#allocation3], %s659
        %s661 = sand.u32 %s115, 1
        %s662 = smul.addr %s661, 8
        %s663 = scalar_lea.vmem [#allocation2], %s662
        // Predicated region
        $region37: #{mfcc.1} parent=35 // pred_check
          %p664 = pneg %p125
        $region38: #{mfcc.1} parent=35 // pred_check_branch
          %666 = sbr.rel (%p664) target = $region40
        $region39: #{mfcc.1} parent=35 // pred_region
          %s668 = ssub.s32 128, 128
          %669 = vsyncadd %s660, %s668
          %s670 = smul.addr %s18, 128
          %s671 = scalar_lea.hbm %s4, %s670
          %s673 = sshll.u32 %s663, 4
          %s674 = int_to_ptr.vmem [resolvable:$true] %s673
          %676 = dma.vmem_to_hbm [thread:$0]  %s674, 128, %s671, %s660
        $region40: #{mfcc.1} parent=35 // pred_fallthru
          _
      $region36: #{mfcc.1} parent=5 // pred_fallthru
        _
      %p677 = scmp.le.s32.totalorder 2, %s13
      // Predicated region
      $region41: #{mfcc.1} parent=5 // pred_check
        %p678 = pneg %p677
      $region42: #{mfcc.1} parent=5 // pred_check_branch
        %680 = sbr.rel (%p678) target = $region44
      $region43: #{mfcc.1} parent=5 // pred_region
        %s681 = ssub.s32 %s13, 2
        // Predicated region
        $region45: #{mfcc.1} parent=43 // pred_check
          %p682 = pneg %p131
        $region46: #{mfcc.1} parent=43 // pred_check_branch
          %684 = sbr.rel (%p682) target = $region48
        $region47: #{mfcc.1} parent=43 // pred_region
          %s685 = sand.u32 %s116, 1
          %s686 = scalar_lea.sflag [#allocation3], %s685
          %s687 = sand.u32 %s116, 1
          %s688 = smul.addr %s687, 8
          %s689 = scalar_lea.vmem [#allocation2], %s688
          %690 = dma.done %s686, 128
        $region48: #{mfcc.1} parent=43 // pred_fallthru
          _
      $region44: #{mfcc.1} parent=5 // pred_fallthru
        _
    $region6: #{mfcc.1} parent=1 // loop_footer
      %s17 = sadd.s32 1, %s13
    $region7: #{mfcc.1} parent=1 // loop_footer_branch
      %12 = sbr.rel target = $region3
    $region8: #{mfcc.1} parent=1 // loop_exit
      _
    %691 = vsyncpa [#allocation3], 1
    %s692 = scalar_lea.sflag [#allocation3], 1
    %693 = vsyncpa %s692, 1

</llo_original>
